<compile_context>
chip_gen: v6e
topology: v6e:2x2x1
jax: 0.10.0
libtpu: 0.0.40
codegen_flags: <defaults>
</compile_context>

<pallas_src>
import jax
import jax.numpy as jnp
from jax import lax
from jax.experimental import pallas as pl
from jax.experimental.pallas import tpu as pltpu


def _disc_kernel(x_ref, w1t_ref, b1t_ref, w2t_ref, b2t_ref, w3t_ref, b3t_ref, o_ref):
    # x tile: (TB, D0) f32 from HBM; cast to bf16 in-kernel (no wrapper pass).
    x = x_ref[...].astype(jnp.bfloat16)

    # layer 1 (feature-major): (H1, D0) . (TB, D0)^T -> (H1, TB) f32
    h1 = lax.dot_general(
        w1t_ref[...], x,
        dimension_numbers=(((1,), (1,)), ((), ())),
        preferred_element_type=jnp.float32) + b1t_ref[...]
    h1 = jnp.maximum(h1, 0.0)

    # layer 2: (H2, H1) @ (H1, TB) -> (H2, TB) f32
    h2 = jnp.dot(w2t_ref[...], h1.astype(jnp.bfloat16),
                 preferred_element_type=jnp.float32) + b2t_ref[...]
    h2 = jnp.maximum(h2, 0.0)

    # layer 3: (n_attr, H2) @ (H2, TB) -> (n_attr, TB) f32, lane-dense store.
    logits_t = jnp.dot(w3t_ref[...], h2.astype(jnp.bfloat16),
                       preferred_element_type=jnp.float32) + b3t_ref[...]

    # n_attr is tiny; exp lives on the EUP slot (free next to the MXU work).
    o_ref[...] = jax.nn.sigmoid(logits_t)


def prepare_params(params):
    """One-time layout/dtype conversion (hoisted out of the forward call)."""
    return {
        "w1t": params["w1"].T.astype(jnp.bfloat16),   # (H1, D0)
        "b1t": params["b1"].T.astype(jnp.float32),    # (H1, 1)
        "w2t": params["w2"].T.astype(jnp.bfloat16),   # (H2, H1)
        "b2t": params["b2"].T.astype(jnp.float32),    # (H2, 1)
        "w3t": params["w3"].T.astype(jnp.bfloat16),   # (n_attr, H2)
        "b3t": params["b3"].T.astype(jnp.float32),    # (n_attr, 1)
    }


def discriminator_forward(x, prepped, *, tb=1024):
    """x: (B, D0) latent. prepped: output of prepare_params. Returns (B, n_attr)."""
    x = x.astype(jnp.float32)          # mirrors `x.float()`; no-op if already f32
    B, d_in = x.shape
    n_attr = prepped["w3t"].shape[0]

    if B <= tb:
        tb_eff, grid = B, (1,)          # one full-array block (no padding needed)
    else:
        tb_eff = tb                     # keep tb a multiple of 128 (lane-dense out)
        grid = (pl.cdiv(B, tb_eff),)    # ragged last block handled by Pallas masks

    # Constant index maps: weight/bias tiles are DMA'd once and stay VMEM-resident
    # across grid steps (Pallas elides re-fetch when the block index is unchanged).
    const = lambda a: pl.BlockSpec(a.shape, lambda i: (0, 0))

    out_t = pl.pallas_call(
        _disc_kernel,
        out_shape=jax.ShapeDtypeStruct((n_attr, B), jnp.float32),
        grid=grid,
        in_specs=[
            pl.BlockSpec((tb_eff, d_in), lambda i: (i, 0)),   # streamed batch tiles
            const(prepped["w1t"]), const(prepped["b1t"]),
            const(prepped["w2t"]), const(prepped["b2t"]),
            const(prepped["w3t"]), const(prepped["b3t"]),
        ],
        out_specs=pl.BlockSpec((n_attr, tb_eff), lambda i: (0, i)),
        compiler_params=pltpu.CompilerParams(
            dimension_semantics=("parallel",)),               # dual-TC on v7x
    )(x, prepped["w1t"], prepped["b1t"], prepped["w2t"], prepped["b2t"],
      prepped["w3t"], prepped["b3t"])

    return out_t.T                       # back to PyTorch layout (B, n_attr)


def init_params(key, d_in=32, d_h1=64, d_h2=32, n_attr=2):
    ks = jax.random.split(key, 6)
    scale = lambda fan_in: 1.0 / jnp.sqrt(fan_in)
    return {
        "w1": jax.random.normal(ks[0], (d_in, d_h1), jnp.float32) * scale(d_in),
        "b1": jax.random.normal(ks[1], (1, d_h1), jnp.float32) * 0.01,
        "w2": jax.random.normal(ks[2], (d_h1, d_h2), jnp.float32) * scale(d_h1),
        "b2": jax.random.normal(ks[3], (1, d_h2), jnp.float32) * 0.01,
        "w3": jax.random.normal(ks[4], (d_h2, n_attr), jnp.float32) * scale(d_h2),
        "b3": jax.random.normal(ks[5], (1, n_attr), jnp.float32) * 0.01,
    }


def _reference(x, p):
    h1 = jnp.maximum(x @ p["w1"] + p["b1"], 0.0)
    h2 = jnp.maximum(h1 @ p["w2"] + p["b2"], 0.0)
    return jax.nn.sigmoid(h2 @ p["w3"] + p["b3"])


if __name__ == "__main__":
    key = jax.random.PRNGKey(0)
    k_x, k_x2, k_p = jax.random.split(key, 3)

    latent_dim = 32
    params = init_params(k_p, d_in=latent_dim)
    prepped = prepare_params(params)          # one-time weight layout conversion

    # Small case from the module spec (batch=2 latents).
    x = jax.random.normal(k_x, (2, latent_dim), jnp.float32)
    out = discriminator_forward(x, prepped)
    jax.block_until_ready(out)
    ref = _reference(x, params)
    assert out.shape == (2, 2)
    assert bool(jnp.all((out > 0.0) & (out < 1.0)))
    assert bool(jnp.allclose(out, ref, atol=5e-2, rtol=5e-2))   # bf16 MXU tolerance

    # Multi-tile + ragged-last-block path (no wrapper-side padding anywhere).
    x2 = jax.random.normal(k_x2, (300, latent_dim), jnp.float32)
    out2 = discriminator_forward(x2, prepped, tb=128)
    jax.block_until_ready(out2)
    ref2 = _reference(x2, params)
    assert out2.shape == (300, 2)
    assert bool(jnp.allclose(out2, ref2, atol=5e-2, rtol=5e-2))

    print("KERNEL_OK")
</pallas_src>

<mosaic_0001>
module attributes {stable_mosaic.version = 11 : i64} {
  func.func @_disc_kernel(%arg0: i32, %arg1: memref<2x32xf32, #tpu.memory_space<vmem>>, %arg2: memref<64x32xbf16, #tpu.memory_space<vmem>>, %arg3: memref<64x1xf32, #tpu.memory_space<vmem>>, %arg4: memref<32x64xbf16, #tpu.memory_space<vmem>>, %arg5: memref<32x1xf32, #tpu.memory_space<vmem>>, %arg6: memref<2x32xbf16, #tpu.memory_space<vmem>>, %arg7: memref<2x1xf32, #tpu.memory_space<vmem>>, %arg8: memref<2x2xf32, #tpu.memory_space<vmem>>) attributes {dimension_semantics = [#tpu.dimension_semantics<parallel>], iteration_bounds = array<i64: 1>, scalar_prefetch = 0 : i64, scratch_operands = 0 : i64, tpu.core_type = #tpu.core_type<tc>, window_params = [{transform_indices = @transform_0, window_bounds = array<i64: 2, 32>}, {pipeline_mode = #tpu.pipeline_mode<synchronous>, transform_indices = @transform_1, window_bounds = array<i64: 64, 32>}, {pipeline_mode = #tpu.pipeline_mode<synchronous>, transform_indices = @transform_2, window_bounds = array<i64: 64, 1>}, {pipeline_mode = #tpu.pipeline_mode<synchronous>, transform_indices = @transform_3, window_bounds = array<i64: 32, 64>}, {pipeline_mode = #tpu.pipeline_mode<synchronous>, transform_indices = @transform_4, window_bounds = array<i64: 32, 1>}, {pipeline_mode = #tpu.pipeline_mode<synchronous>, transform_indices = @transform_5, window_bounds = array<i64: 2, 32>}, {pipeline_mode = #tpu.pipeline_mode<synchronous>, transform_indices = @transform_6, window_bounds = array<i64: 2, 1>}, {transform_indices = @transform_7, window_bounds = array<i64: 2, 2>}]} {
    %c0 = arith.constant 0 : index
    %c0_0 = arith.constant 0 : index
    %0 = vector.load %arg1[%c0, %c0_0] : memref<2x32xf32, #tpu.memory_space<vmem>>, vector<2x32xf32>
    %1 = arith.truncf %0 : vector<2x32xf32> to vector<2x32xbf16>
    %c0_1 = arith.constant 0 : index
    %c0_2 = arith.constant 0 : index
    %2 = vector.load %arg2[%c0_1, %c0_2] : memref<64x32xbf16, #tpu.memory_space<vmem>>, vector<64x32xbf16>
    %cst = arith.constant dense<0.000000e+00> : vector<64x2xf32>
    %3 = tpu.matmul %2, %1, %cst {dimension_numbers = #tpu.dot_dimension_numbers<[1], [1], [0], [0], [0, 0, 1, 0], [], []>} : vector<64x32xbf16>, vector<2x32xbf16>, vector<64x2xf32> -> vector<64x2xf32>
    %c0_3 = arith.constant 0 : index
    %c0_4 = arith.constant 0 : index
    %4 = vector.load %arg3[%c0_3, %c0_4] : memref<64x1xf32, #tpu.memory_space<vmem>>, vector<64x1xf32>
    %5 = vector.broadcast %4 : vector<64x1xf32> to vector<64x2xf32>
    %6 = arith.addf %3, %5 : vector<64x2xf32>
    %cst_5 = arith.constant 0.000000e+00 : f32
    %7 = vector.broadcast %cst_5 : f32 to vector<64x2xf32>
    %8 = arith.maximumf %6, %7 : vector<64x2xf32>
    %c0_6 = arith.constant 0 : index
    %c0_7 = arith.constant 0 : index
    %9 = vector.load %arg4[%c0_6, %c0_7] : memref<32x64xbf16, #tpu.memory_space<vmem>>, vector<32x64xbf16>
    %10 = arith.truncf %8 : vector<64x2xf32> to vector<64x2xbf16>
    %cst_8 = arith.constant dense<0.000000e+00> : vector<32x2xf32>
    %11 = tpu.matmul %9, %10, %cst_8 {dimension_numbers = #tpu.dot_dimension_numbers<[1], [0], [0], [1], [0, 0, 1, 1], [], []>} : vector<32x64xbf16>, vector<64x2xbf16>, vector<32x2xf32> -> vector<32x2xf32>
    %c0_9 = arith.constant 0 : index
    %c0_10 = arith.constant 0 : index
    %12 = vector.load %arg5[%c0_9, %c0_10] : memref<32x1xf32, #tpu.memory_space<vmem>>, vector<32x1xf32>
    %13 = vector.broadcast %12 : vector<32x1xf32> to vector<32x2xf32>
    %14 = arith.addf %11, %13 : vector<32x2xf32>
    %cst_11 = arith.constant 0.000000e+00 : f32
    %15 = vector.broadcast %cst_11 : f32 to vector<32x2xf32>
    %16 = arith.maximumf %14, %15 : vector<32x2xf32>
    %c0_12 = arith.constant 0 : index
    %c0_13 = arith.constant 0 : index
    %17 = vector.load %arg6[%c0_12, %c0_13] : memref<2x32xbf16, #tpu.memory_space<vmem>>, vector<2x32xbf16>
    %18 = arith.truncf %16 : vector<32x2xf32> to vector<32x2xbf16>
    %cst_14 = arith.constant dense<0.000000e+00> : vector<2x2xf32>
    %19 = tpu.matmul %17, %18, %cst_14 {dimension_numbers = #tpu.dot_dimension_numbers<[1], [0], [0], [1], [0, 0, 1, 1], [], []>} : vector<2x32xbf16>, vector<32x2xbf16>, vector<2x2xf32> -> vector<2x2xf32>
    %c0_15 = arith.constant 0 : index
    %c0_16 = arith.constant 0 : index
    %20 = vector.load %arg7[%c0_15, %c0_16] : memref<2x1xf32, #tpu.memory_space<vmem>>, vector<2x1xf32>
    %21 = vector.broadcast %20 : vector<2x1xf32> to vector<2x2xf32>
    %22 = arith.addf %19, %21 : vector<2x2xf32>
    %23 = arith.negf %22 : vector<2x2xf32>
    %24 = math.exp %23 : vector<2x2xf32>
    %cst_17 = arith.constant 1.000000e+00 : f32
    %25 = vector.broadcast %cst_17 : f32 to vector<2x2xf32>
    %26 = arith.addf %25, %24 : vector<2x2xf32>
    %27 = arith.divf %25, %26 : vector<2x2xf32>
    %c0_18 = arith.constant 0 : index
    %c0_19 = arith.constant 0 : index
    %28 = vector.load %arg8[%c0_18, %c0_19] : memref<2x2xf32, #tpu.memory_space<vmem>>, vector<2x2xf32>
    tpu.vector_store %arg8[%c0_18, %c0_19], %27 {strides = array<i32>} : memref<2x2xf32, #tpu.memory_space<vmem>>, vector<2x2xf32>,
    return
  }
  func.func @transform_0(%arg0: i32) -> (i32, i32) {
    %c0_i32 = arith.constant 0 : i32
    %c0_i32_0 = arith.constant 0 : i32
    return %arg0, %c0_i32 : i32, i32
  }
  func.func @transform_1(%arg0: i32) -> (i32, i32) {
    %c0_i32 = arith.constant 0 : i32
    %c0_i32_0 = arith.constant 0 : i32
    %c0_i32_1 = arith.constant 0 : i32
    return %c0_i32, %c0_i32_0 : i32, i32
  }
  func.func @transform_2(%arg0: i32) -> (i32, i32) {
    %c0_i32 = arith.constant 0 : i32
    %c0_i32_0 = arith.constant 0 : i32
    %c0_i32_1 = arith.constant 0 : i32
    return %c0_i32, %c0_i32_0 : i32, i32
  }
  func.func @transform_3(%arg0: i32) -> (i32, i32) {
    %c0_i32 = arith.constant 0 : i32
    %c0_i32_0 = arith.constant 0 : i32
    %c0_i32_1 = arith.constant 0 : i32
    return %c0_i32, %c0_i32_0 : i32, i32
  }
  func.func @transform_4(%arg0: i32) -> (i32, i32) {
    %c0_i32 = arith.constant 0 : i32
    %c0_i32_0 = arith.constant 0 : i32
    %c0_i32_1 = arith.constant 0 : i32
    return %c0_i32, %c0_i32_0 : i32, i32
  }
  func.func @transform_5(%arg0: i32) -> (i32, i32) {
    %c0_i32 = arith.constant 0 : i32
    %c0_i32_0 = arith.constant 0 : i32
    %c0_i32_1 = arith.constant 0 : i32
    return %c0_i32, %c0_i32_0 : i32, i32
  }
  func.func @transform_6(%arg0: i32) -> (i32, i32) {
    %c0_i32 = arith.constant 0 : i32
    %c0_i32_0 = arith.constant 0 : i32
    %c0_i32_1 = arith.constant 0 : i32
    return %c0_i32, %c0_i32_0 : i32, i32
  }
  func.func @transform_7(%arg0: i32) -> (i32, i32) {
    %c0_i32 = arith.constant 0 : i32
    %c0_i32_0 = arith.constant 0 : i32
    return %c0_i32, %arg0 : i32, i32
  }
}

</mosaic_0001>

<llo_original>
// kernel: tpu_custom_call.1
$region0: #{tpu_custom_call.1}
  #allocation0 [shape = 'u32[]', space=smem, size = 0x4, offset = 0x4, fixed_abs, tag = 'smem constant byte address 0x4 - core index']
  #allocation1 [shape = 'u32[144,128]{1,0:T(1,128)}', space=vmem, size = 0x12000, scoped, tag = 'internal scratch']
  %s0 = inlined_call_operand.vmem [shape: f32[2,32], index: 0, kind: input, shape index: {}]
  %s1 = inlined_call_operand.vmem [shape: bf16[64,32], index: 1, kind: input, shape index: {}]
  %s2 = inlined_call_operand.vmem [shape: f32[64,1], index: 2, kind: input, shape index: {}]
  %s3 = inlined_call_operand.vmem [shape: bf16[32,64], index: 3, kind: input, shape index: {}]
  %s4 = inlined_call_operand.vmem [shape: f32[32,1], index: 4, kind: input, shape index: {}]
  %s5 = inlined_call_operand.vmem [shape: bf16[2,32], index: 5, kind: input, shape index: {}]
  %s6 = inlined_call_operand.vmem [shape: f32[2,1], index: 6, kind: input, shape index: {}]
  %s7 = inlined_call_operand.hbm [shape: f32[2,2], index: 7, kind: output, shape index: {}]
  %s8 = sld [smem:[#allocation0]]
  $region38: #{tpu_custom_call.1} parent=0
    _
  %s10 = ssub.s32 1, %s8
  %s11 = scalar_select 0, %s10, %s8
  $region1: #{tpu_custom_call.1} parent=0
    #allocation2 [shape = 'u8[1024]{0}', space=vmem, size = 0x400, scoped, tag = 'output window, operand 0, single buffered']
    #allocation3 [shape = 's32[1]{0}', space=sflag, size = 0x4, scoped, tag = 'scoped memory for tpu_custom_call.1']
    %12 = vsyncpa [#allocation3], 0
    // Predicated region
    $region2: #{tpu_custom_call.1} parent=1 // pred_check
      _
    $region3: #{tpu_custom_call.1} parent=1 // pred_check_branch
      %14 = sbr.rel (0) target = $region5
    $region4: #{tpu_custom_call.1} parent=1 // pred_region
      _
    $region5: #{tpu_custom_call.1} parent=1 // pred_fallthru
      _
    // Predicated region
    $region6: #{tpu_custom_call.1} parent=1 // pred_check
      _
    $region7: #{tpu_custom_call.1} parent=1 // pred_check_branch
      %16 = sbr.rel (0) target = $region9
    $region8: #{tpu_custom_call.1} parent=1 // pred_region
      _
    $region9: #{tpu_custom_call.1} parent=1 // pred_fallthru
      _
    // Predicated region
    $region10: #{tpu_custom_call.1} parent=1 // pred_check
      _
    $region11: #{tpu_custom_call.1} parent=1 // pred_check_branch
      %18 = sbr.rel (0) target = $region13
    $region12: #{tpu_custom_call.1} parent=1 // pred_region
      _
    $region13: #{tpu_custom_call.1} parent=1 // pred_fallthru
      _
    // Predicated region
    $region14: #{tpu_custom_call.1} parent=1 // pred_check
      _
    $region15: #{tpu_custom_call.1} parent=1 // pred_check_branch
      %20 = sbr.rel (0) target = $region17
    $region16: #{tpu_custom_call.1} parent=1 // pred_region
      _
    $region17: #{tpu_custom_call.1} parent=1 // pred_fallthru
      _
    // Predicated region
    $region18: #{tpu_custom_call.1} parent=1 // pred_check
      _
    $region19: #{tpu_custom_call.1} parent=1 // pred_check_branch
      %22 = sbr.rel (0) target = $region21
    $region20: #{tpu_custom_call.1} parent=1 // pred_region
      _
    $region21: #{tpu_custom_call.1} parent=1 // pred_fallthru
      _
    // Predicated region
    $region22: #{tpu_custom_call.1} parent=1 // pred_check
      _
    $region23: #{tpu_custom_call.1} parent=1 // pred_check_branch
      %24 = sbr.rel (0) target = $region25
    $region24: #{tpu_custom_call.1} parent=1 // pred_region
      _
    $region25: #{tpu_custom_call.1} parent=1 // pred_fallthru
      _
    // Predicated region
    $region26: #{tpu_custom_call.1} parent=1 // pred_check
      _
    $region27: #{tpu_custom_call.1} parent=1 // pred_check_branch
      %26 = sbr.rel (0) target = $region29
    $region28: #{tpu_custom_call.1} parent=1 // pred_region
      _
    $region29: #{tpu_custom_call.1} parent=1 // pred_fallthru
      _
    %v28 = vld [vmem:[%s0] sm:$0x3]
    %v29 = vpack.c.bf16 %v28, %v28
    %v30 = vld [vmem:[%s1] sm:$0xf]
    %v31 = vld [vmem:[%s1 + $0x4] sm:$0xf]
    %v32 = vld [vmem:[%s1 + $0x8] sm:$0xf]
    %v33 = vld [vmem:[%s1 + $0xc] sm:$0xf]
    %v34 = vld [vmem:[%s1 + $0x10] sm:$0xf]
    %v35 = vld [vmem:[%s1 + $0x14] sm:$0xf]
    %v36 = vld [vmem:[%s1 + $0x18] sm:$0xf]
    %v37 = vld [vmem:[%s1 + $0x1c] sm:$0xf]
    %v38 = vld [vmem:[%s2] sm:$0xff]
    %v39 = vld [vmem:[%s2 + $0x8] sm:$0xff]
    %v40 = vld [vmem:[%s2 + $0x10] sm:$0xff]
    %v41 = vld [vmem:[%s2 + $0x18] sm:$0xff]
    %v42 = vld [vmem:[%s2 + $0x20] sm:$0xff]
    %v43 = vld [vmem:[%s2 + $0x28] sm:$0xff]
    %v44 = vld [vmem:[%s2 + $0x30] sm:$0xff]
    %v45 = vld [vmem:[%s2 + $0x38] sm:$0xff]
    %47 = vset.pattern.permute.xlu0 0
    %48 = vperm.xlu0 %47, %v38
    %v49 = vpop.permute.xlu0 %48
    %52 = vset.pattern.permute.xlu0 0
    %53 = vperm.xlu0 %52, %v39
    %v54 = vpop.permute.xlu0 %53
    %57 = vset.pattern.permute.xlu0 0
    %58 = vperm.xlu0 %57, %v40
    %v59 = vpop.permute.xlu0 %58
    %62 = vset.pattern.permute.xlu0 0
    %63 = vperm.xlu0 %62, %v41
    %v64 = vpop.permute.xlu0 %63
    %67 = vset.pattern.permute.xlu0 0
    %68 = vperm.xlu0 %67, %v42
    %v69 = vpop.permute.xlu0 %68
    %72 = vset.pattern.permute.xlu0 0
    %73 = vperm.xlu0 %72, %v43
    %v74 = vpop.permute.xlu0 %73
    %77 = vset.pattern.permute.xlu0 0
    %78 = vperm.xlu0 %77, %v44
    %v79 = vpop.permute.xlu0 %78
    %82 = vset.pattern.permute.xlu0 0
    %83 = vperm.xlu0 %82, %v45
    %v84 = vpop.permute.xlu0 %83
    %v94 = vunpack.c.l.b16 %v30
    %v95 = vunpack.c.l.b16 %v31
    %v96 = vunpack.c.l.b16 %v32
    %v97 = vunpack.c.l.b16 %v33
    %v98 = vunpack.c.l.b16 %v34
    %v99 = vunpack.c.l.b16 %v35
    %v100 = vunpack.c.l.b16 %v36
    %v101 = vunpack.c.l.b16 %v37
    %v102 = vpack.c.b16 %v95, %v94
    %v103 = vpack.c.b16 %v97, %v96
    %v104 = vpack.c.b16 %v99, %v98
    %v105 = vpack.c.b16 %v101, %v100
    %vm106 = vcmask 261120
    %v108 = vsel %vm106, %v102, 0
    %v111 = vsel %vm106, %v103, 0
    %v114 = vsel %vm106, %v104, 0
    %v117 = vsel %vm106, %v105, 0
    %v120 = vsel %vm106, %v29, 0
    %122 = vmatprep.subr.bf16.mxu0 0
    %123 = vmatpush1.bf16.xpose.msra.mxu0 0
    %124 = vmatprep.subr.bf16.mxu0 0
    %125 = vmatpush1.bf16.xpose.msra.mxu0 0
    %126 = vmatprep.subr.bf16.mxu0 0
    %127 = vmatpush1.bf16.xpose.msra.mxu0 0
    %128 = vmatprep.subr.bf16.mxu0 0
    %129 = vmatpush1.bf16.xpose.msra.mxu0 0
    %130 = vmatprep.subr.bf16.mxu0 0
    %131 = vmatpush1.bf16.xpose.msra.mxu0 0
    %132 = vmatprep.subr.bf16.mxu0 0
    %133 = vmatpush1.bf16.xpose.msra.mxu0 0
    %134 = vmatprep.subr.bf16.mxu0 0
    %135 = vmatpush1.bf16.xpose.msra.mxu0 0
    %136 = vmatprep.subr.bf16.mxu0 0
    %137 = vmatpush1.bf16.xpose.msra.mxu0 %v120
    %138 = vmatprep.subr.bf16.mxu0 0
    %139 = vmatpush2.bf16.xpose.msra.mxu0 0
    %140 = vmatprep.subr.bf16.mxu0 0
    %141 = vmatpush2.bf16.xpose.msra.mxu0 0
    %142 = vmatprep.subr.bf16.mxu0 0
    %143 = vmatpush2.bf16.xpose.msra.mxu0 0
    %144 = vmatprep.subr.bf16.mxu0 0
    %145 = vmatpush2.bf16.xpose.msra.mxu0 0
    %146 = vmatprep.subr.bf16.mxu0 0
    %147 = vmatpush2.bf16.xpose.msra.mxu0 0
    %148 = vmatprep.subr.bf16.mxu0 0
    %149 = vmatpush2.bf16.xpose.msra.mxu0 0
    %150 = vmatprep.subr.bf16.mxu0 0
    %151 = vmatpush2.bf16.xpose.msra.mxu0 0
    %152 = vmatprep.subr.bf16.mxu0 0
    %153 = vmatpush2.bf16.xpose.msra.mxu0 0
    %154 = vmatprep.mubr.bf16.mxu0 0
    %155 = vmatmul.mubr.bf16.gmra.mxu0 %v108
    %v156 = vpop.f32.mrf.mxu0
    %v157 = vadd.f32 %v49, %v156
    %v158 = vpop.f32.mrf.mxu0
    %v159 = vpop.f32.mrf.mxu0
    %v160 = vadd.f32 %v54, %v159
    %v161 = vpop.f32.mrf.mxu0
    %162 = vmatprep.mubr.bf16.mxu0 0
    %163 = vmatmul.mubr.bf16.gmra.mxu0 %v111
    %v164 = vpop.f32.mrf.mxu0
    %v165 = vadd.f32 %v59, %v164
    %v166 = vpop.f32.mrf.mxu0
    %v167 = vpop.f32.mrf.mxu0
    %v168 = vadd.f32 %v64, %v167
    %v169 = vpop.f32.mrf.mxu0
    %170 = vmatprep.mubr.bf16.mxu0 0
    %171 = vmatmul.mubr.bf16.gmra.mxu0 %v114
    %v172 = vpop.f32.mrf.mxu0
    %v173 = vadd.f32 %v69, %v172
    %v174 = vpop.f32.mrf.mxu0
    %v175 = vpop.f32.mrf.mxu0
    %v176 = vadd.f32 %v74, %v175
    %v177 = vpop.f32.mrf.mxu0
    %178 = vmatprep.mubr.bf16.mxu0 0
    %179 = vmatmul.mubr.bf16.gmra.mxu0 %v117
    %v180 = vpop.f32.mrf.mxu0
    %v181 = vadd.f32 %v79, %v180
    %v182 = vpop.f32.mrf.mxu0
    %v183 = vpop.f32.mrf.mxu0
    %v184 = vadd.f32 %v84, %v183
    %v185 = vpop.f32.mrf.mxu0
    %186 = vdwg.mxu0
    %v187 = vmax.f32 %v157, 0.0
    %v188 = vmax.f32 %v160, 0.0
    %v189 = vmax.f32 %v165, 0.0
    %v190 = vmax.f32 %v168, 0.0
    %v191 = vmax.f32 %v173, 0.0
    %v192 = vmax.f32 %v176, 0.0
    %v193 = vmax.f32 %v181, 0.0
    %v194 = vmax.f32 %v184, 0.0
    %v195 = vld [vmem:[%s3] sm:$0xf]
    %v196 = vld [vmem:[%s3 + $0x4] sm:$0xf]
    %v197 = vld [vmem:[%s3 + $0x8] sm:$0xf]
    %v198 = vld [vmem:[%s3 + $0xc] sm:$0xf]
    %v199 = vpack.c.bf16 %v188, %v187
    %v200 = vpack.c.bf16 %v190, %v189
    %v201 = vpack.c.bf16 %v192, %v191
    %v202 = vpack.c.bf16 %v194, %v193
    %v203 = vld [vmem:[%s4] sm:$0xff]
    %v204 = vld [vmem:[%s4 + $0x8] sm:$0xff]
    %v205 = vld [vmem:[%s4 + $0x10] sm:$0xff]
    %v206 = vld [vmem:[%s4 + $0x18] sm:$0xff]
    %208 = vset.pattern.permute.xlu0 0
    %209 = vperm.xlu0 %208, %v203
    %v210 = vpop.permute.xlu0 %209
    %213 = vset.pattern.permute.xlu0 0
    %214 = vperm.xlu0 %213, %v204
    %v215 = vpop.permute.xlu0 %214
    %218 = vset.pattern.permute.xlu0 0
    %219 = vperm.xlu0 %218, %v205
    %v220 = vpop.permute.xlu0 %219
    %223 = vset.pattern.permute.xlu0 0
    %224 = vperm.xlu0 %223, %v206
    %v225 = vpop.permute.xlu0 %224
    %v231 = vunpack.c.l.b16 %v195
    %v232 = vunpack.c.l.b16 %v196
    %v233 = vunpack.c.l.b16 %v197
    %v234 = vunpack.c.l.b16 %v198
    %v235 = vpack.c.b16 %v232, %v231
    %v236 = vpack.c.b16 %v234, %v233
    %vm237 = vcmask 523264
    %v239 = vsel %vm237, %v235, 0
    %v242 = vsel %vm237, %v236, 0
    %244 = vmatprep.subr.bf16.mxu0 0
    %245 = vmatpush1.bf16.msra.mxu0 0
    %246 = vmatprep.subr.bf16.mxu0 0
    %247 = vmatpush1.bf16.msra.mxu0 0
    %248 = vmatprep.subr.bf16.mxu0 0
    %249 = vmatpush1.bf16.msra.mxu0 0
    %250 = vmatprep.subr.bf16.mxu0 0
    %251 = vmatpush1.bf16.msra.mxu0 0
    %252 = vmatprep.subr.bf16.mxu0 0
    %253 = vmatpush1.bf16.msra.mxu0 %v202
    %254 = vmatprep.subr.bf16.mxu0 0
    %255 = vmatpush1.bf16.msra.mxu0 %v201
    %256 = vmatprep.subr.bf16.mxu0 0
    %257 = vmatpush1.bf16.msra.mxu0 %v200
    %258 = vmatprep.subr.bf16.mxu0 0
    %259 = vmatpush1.bf16.msra.mxu0 %v199
    %260 = vmatprep.subr.bf16.mxu0 0
    %261 = vmatpush2.bf16.msra.mxu0 0
    %262 = vmatprep.subr.bf16.mxu0 0
    %263 = vmatpush2.bf16.msra.mxu0 0
    %264 = vmatprep.subr.bf16.mxu0 0
    %265 = vmatpush2.bf16.msra.mxu0 0
    %266 = vmatprep.subr.bf16.mxu0 0
    %267 = vmatpush2.bf16.msra.mxu0 0
    %268 = vmatprep.subr.bf16.mxu0 0
    %269 = vmatpush2.bf16.msra.mxu0 0
    %270 = vmatprep.subr.bf16.mxu0 0
    %271 = vmatpush2.bf16.msra.mxu0 0
    %272 = vmatprep.subr.bf16.mxu0 0
    %273 = vmatpush2.bf16.msra.mxu0 0
    %274 = vmatprep.subr.bf16.mxu0 0
    %275 = vmatpush2.bf16.msra.mxu0 0
    %276 = vmatprep.mubr.bf16.mxu0 0
    %277 = vmatmul.mubr.bf16.gmra.mxu0 %v239
    %v278 = vpop.f32.mrf.mxu0
    %v279 = vadd.f32 %v210, %v278
    %v280 = vpop.f32.mrf.mxu0
    %v281 = vpop.f32.mrf.mxu0
    %v282 = vadd.f32 %v215, %v281
    %v283 = vpop.f32.mrf.mxu0
    %284 = vmatprep.mubr.bf16.mxu0 0
    %285 = vmatmul.mubr.bf16.gmra.mxu0 %v242
    %v286 = vpop.f32.mrf.mxu0
    %v287 = vadd.f32 %v220, %v286
    %v288 = vpop.f32.mrf.mxu0
    %v289 = vpop.f32.mrf.mxu0
    %v290 = vadd.f32 %v225, %v289
    %v291 = vpop.f32.mrf.mxu0
    %292 = vdwg.mxu0
    %v293 = vmax.f32 %v279, 0.0
    %v294 = vmax.f32 %v282, 0.0
    %v295 = vmax.f32 %v287, 0.0
    %v296 = vmax.f32 %v290, 0.0
    %v297 = vld [vmem:[%s5] sm:$0x1]
    %v298 = vpack.c.bf16 %v294, %v293
    %v299 = vpack.c.bf16 %v296, %v295
    %v300 = vld [vmem:[%s6] sm:$0x3]
    %302 = vset.pattern.permute.xlu0 0
    %303 = vperm.xlu0 %302, %v300
    %v304 = vpop.permute.xlu0 %303
    %v307 = vsel %vm106, %v297, 0
    %309 = vmatprep.subr.bf16.mxu0 0
    %310 = vmatpush1.bf16.msra.mxu0 0
    %311 = vmatprep.subr.bf16.mxu0 0
    %312 = vmatpush1.bf16.msra.mxu0 0
    %313 = vmatprep.subr.bf16.mxu0 0
    %314 = vmatpush1.bf16.msra.mxu0 0
    %315 = vmatprep.subr.bf16.mxu0 0
    %316 = vmatpush1.bf16.msra.mxu0 0
    %317 = vmatprep.subr.bf16.mxu0 0
    %318 = vmatpush1.bf16.msra.mxu0 0
    %319 = vmatprep.subr.bf16.mxu0 0
    %320 = vmatpush1.bf16.msra.mxu0 0
    %321 = vmatprep.subr.bf16.mxu0 0
    %322 = vmatpush1.bf16.msra.mxu0 %v299
    %323 = vmatprep.subr.bf16.mxu0 0
    %324 = vmatpush1.bf16.msra.mxu0 %v298
    %325 = vmatprep.subr.bf16.mxu0 0
    %326 = vmatpush2.bf16.msra.mxu0 0
    %327 = vmatprep.subr.bf16.mxu0 0
    %328 = vmatpush2.bf16.msra.mxu0 0
    %329 = vmatprep.subr.bf16.mxu0 0
    %330 = vmatpush2.bf16.msra.mxu0 0
    %331 = vmatprep.subr.bf16.mxu0 0
    %332 = vmatpush2.bf16.msra.mxu0 0
    %333 = vmatprep.subr.bf16.mxu0 0
    %334 = vmatpush2.bf16.msra.mxu0 0
    %335 = vmatprep.subr.bf16.mxu0 0
    %336 = vmatpush2.bf16.msra.mxu0 0
    %337 = vmatprep.subr.bf16.mxu0 0
    %338 = vmatpush2.bf16.msra.mxu0 0
    %339 = vmatprep.subr.bf16.mxu0 0
    %340 = vmatpush2.bf16.msra.mxu0 0
    %341 = vmatprep.mubr.bf16.mxu0 0
    %342 = vmatmul.mubr.bf16.gmra.mxu0 %v307
    %v343 = vpop.f32.mrf.mxu0
    %v344 = vadd.f32 %v304, %v343
    %v345 = vpop.f32.mrf.mxu0
    %v346 = vpop.f32.mrf.mxu0
    %v347 = vpop.f32.mrf.mxu0
    %348 = vdwg.mxu0
    %v349 = vxor.u32 %v344, 2147483648
    %v350 = vmul.f32 %v349, 1.442695
    %v351 = vpow.pop %v350
    %v352 = vadd.f32 %v351, 1.0
    %v353 = vrcp.pop %v352
    %v354 = vmul.f32 1.0, %v353
    %vm355 = vcmask 9216
    %356 = vst.msk [vmem:[#allocation2] sm:$0x3] %vm355, %v354
    // Predicated region
    $region30: #{tpu_custom_call.1} parent=1 // pred_check
      _
    $region31: #{tpu_custom_call.1} parent=1 // pred_check_branch
      %358 = sbr.rel (0) target = $region33
    $region32: #{tpu_custom_call.1} parent=1 // pred_region
      %s360 = ssub.s32 32, 32
      %361 = vsyncadd [#allocation3], %s360
      %s363 = sshll.u32 [#allocation2], 4
      %s364 = int_to_ptr.vmem [resolvable:$true] %s363
      %366 = dma.vmem_to_hbm [thread:$0]  %s364, 32, %s7, [#allocation3]
    $region33: #{tpu_custom_call.1} parent=1 // pred_fallthru
      _
    // Predicated region
    $region34: #{tpu_custom_call.1} parent=1 // pred_check
      _
    $region35: #{tpu_custom_call.1} parent=1 // pred_check_branch
      %368 = sbr.rel (0) target = $region37
    $region36: #{tpu_custom_call.1} parent=1 // pred_region
      %369 = dma.done [#allocation3], 32
    $region37: #{tpu_custom_call.1} parent=1 // pred_fallthru
      _
    %370 = vsyncpa [#allocation3], 1

</llo_original>
